<compile_context>
chip_gen: v5e
topology: v5e:2x2
jax: 0.10.0
libtpu: 0.0.40
codegen_flags: <defaults>
</compile_context>

<pallas_src>
import jax
import jax.numpy as jnp
from jax.experimental import pallas as pl
from jax.experimental.pallas import tpu as pltpu  # noqa: F401 (TPU backend)

BN_EPS = 1e-5
NEG = -1e30          # bias padding for invalid logit lanes -> softmax prob 0
LANE = 128


def _round_up(n, m):
    return (n + m - 1) // m * m


def player_kernel(x_ref, w1c_ref, b1s_ref, g1_ref, be1_ref,
                  w2_ref, g2_ref, be2_ref,
                  w3_ref, g3_ref, be3_ref,
                  w4_ref, b4_ref, o_ref):
    """Fused forward: ResLinear x3 + Linear + Softmax (all blocks in VMEM)."""
    hp = g1_ref.shape[1]            # padded hidden width (multiple of 128)
    x = x_ref[...]

    def bn_relu(y, gamma, beta):
        # Train-mode BatchNorm1d (biased variance) folded into scale/shift.
        mean = jnp.mean(y, axis=0, keepdims=True)
        d = y - mean
        var = jnp.mean(d * d, axis=0, keepdims=True)
        scale = gamma * jax.lax.rsqrt(var + BN_EPS)
        shift = beta - mean * scale
        return jnp.maximum(y * scale + shift, 0.0)

    # --- layer 1: ResLinear(n_in -> n_hid) with projection skip -------------
    # main & skip matmuls share x -> one fused (n_in, 2*hp) dot.
    z = jnp.dot(x, w1c_ref[...], preferred_element_type=jnp.float32)
    y1 = z[:, :hp]                        # main branch (its bias cancels in BN)
    skip1 = z[:, hp:] + b1s_ref[...]      # projection skip keeps its bias
    h1 = bn_relu(y1, g1_ref[...], be1_ref[...]) + skip1

    # --- layer 2: ResLinear(n_hid -> n_hid), identity skip -------------------
    y2 = jnp.dot(h1, w2_ref[...], preferred_element_type=jnp.float32)
    h2 = bn_relu(y2, g2_ref[...], be2_ref[...]) + h1

    # --- layer 3: ResLinear(n_hid -> n_hid), identity skip -------------------
    y3 = jnp.dot(h2, w3_ref[...], preferred_element_type=jnp.float32)
    h3 = bn_relu(y3, g3_ref[...], be3_ref[...]) + h2

    # --- final Linear + Softmax (padded lanes carry -1e30 bias -> prob 0) ----
    logits = (jnp.dot(h3, w4_ref[...], preferred_element_type=jnp.float32)
              + b4_ref[...])
    m = jnp.max(logits, axis=1, keepdims=True)
    e = jnp.exp(logits - m)
    o_ref[...] = e / jnp.sum(e, axis=1, keepdims=True)


def _pad2(a, rows, cols):
    r, c = a.shape
    return jnp.pad(a, ((0, rows - r), (0, cols - c)))


def _pad_row(v, cols):
    v = v.reshape(1, -1)
    return jnp.pad(v, ((0, 0), (0, cols - v.shape[1])))


@jax.jit
def player_forward(x, p):
    """x: (B, n_in) f32. p: unpadded params (weights stored as (fan_in, fan_out)).

    Note: p["b1"], p["b2"], p["b3"] (linear biases feeding BatchNorm) are part
    of the module but are deliberately NOT passed to the kernel — train-mode BN
    mean subtraction cancels them exactly.
    """
    B, n_in = x.shape
    n_hid = p["w1"].shape[1]
    n_out = p["w4"].shape[1]
    hp = _round_up(n_hid, LANE)
    op = _round_up(n_out, LANE)

    # layer 1: fuse main + projection-skip weights into one wide RHS
    w1c = jnp.concatenate(
        [_pad2(p["w1"], n_in, hp), _pad2(p["w1_skip"], n_in, hp)], axis=1)
    b1s = _pad_row(p["b1_skip"], hp)
    g1, be1 = _pad_row(p["g1"], hp), _pad_row(p["be1"], hp)
    # layers 2/3
    w2 = _pad2(p["w2"], hp, hp)
    g2, be2 = _pad_row(p["g2"], hp), _pad_row(p["be2"], hp)
    w3 = _pad2(p["w3"], hp, hp)
    g3, be3 = _pad_row(p["g3"], hp), _pad_row(p["be3"], hp)
    # final layer: pad bias of invalid lanes with -1e30 so softmax zeroes them
    w4 = _pad2(p["w4"], hp, op)
    b4 = jnp.concatenate(
        [p["b4"].reshape(1, -1),
         jnp.full((1, op - n_out), NEG, jnp.float32)], axis=1)

    full = lambda shape: pl.BlockSpec(shape, lambda: (0,) * len(shape))
    probs_padded = pl.pallas_call(
        player_kernel,
        out_shape=jax.ShapeDtypeStruct((B, op), jnp.float32),
        grid=(),
        in_specs=[
            full((B, n_in)),
            full((n_in, 2 * hp)), full((1, hp)), full((1, hp)), full((1, hp)),
            full((hp, hp)), full((1, hp)), full((1, hp)),
            full((hp, hp)), full((1, hp)), full((1, hp)),
            full((hp, op)), full((1, op)),
        ],
        out_specs=full((B, op)),
    )(x, w1c, b1s, g1, be1, w2, g2, be2, w3, g3, be3, w4, b4)
    return probs_padded[:, :n_out]


def ref_player(x, p):
    """Pure-JAX reference matching the PyTorch Player.forward (normalized=True)."""
    def res_block(h, w, b, g, be, w_skip=None, b_skip=None):
        y = h @ w + b
        mean = y.mean(axis=0, keepdims=True)
        var = ((y - mean) ** 2).mean(axis=0, keepdims=True)
        a = jnp.maximum((y - mean) / jnp.sqrt(var + BN_EPS) * g + be, 0.0)
        return a + (h if w_skip is None else h @ w_skip + b_skip)

    h = res_block(x, p["w1"], p["b1"], p["g1"], p["be1"],
                  p["w1_skip"], p["b1_skip"])
    h = res_block(h, p["w2"], p["b2"], p["g2"], p["be2"])
    h = res_block(h, p["w3"], p["b3"], p["g3"], p["be3"])
    logits = h @ p["w4"] + p["b4"]
    return jax.nn.softmax(logits, axis=1)


if __name__ == "__main__":
    # Player defaults: n_in=128, n_hid=100, n_out=6; small batch.
    B, n_in, n_hid, n_out = 8, 128, 100, 6

    key = jax.random.PRNGKey(0)
    (kx, k1, k1s, k2, k3, k4,
     kg1, kbe1, kg2, kbe2, kg3, kbe3) = jax.random.split(key, 12)

    def linear_init(k, fan_in, fan_out):
        kw, kb = jax.random.split(k)
        bound = 1.0 / jnp.sqrt(jnp.float32(fan_in))
        w = jax.random.uniform(kw, (fan_in, fan_out), jnp.float32, -bound, bound)
        b = jax.random.uniform(kb, (fan_out,), jnp.float32, -bound, bound)
        return w, b

    x = jax.random.normal(kx, (B, n_in), dtype=jnp.float32)
    w1, b1 = linear_init(k1, n_in, n_hid)
    w1s, b1s = linear_init(k1s, n_in, n_hid)
    w2, b2 = linear_init(k2, n_hid, n_hid)
    w3, b3 = linear_init(k3, n_hid, n_hid)
    w4, b4 = linear_init(k4, n_hid, n_out)

    # Non-trivial BN affine params (stronger correctness check than ones/zeros).
    bn = lambda kg, kb: (1.0 + 0.1 * jax.random.normal(kg, (n_hid,), jnp.float32),
                         0.1 * jax.random.normal(kb, (n_hid,), jnp.float32))
    g1, be1 = bn(kg1, kbe1)
    g2, be2 = bn(kg2, kbe2)
    g3, be3 = bn(kg3, kbe3)

    params = dict(
        w1=w1, b1=b1, w1_skip=w1s, b1_skip=b1s, g1=g1, be1=be1,
        w2=w2, b2=b2, g2=g2, be2=be2,
        w3=w3, b3=b3, g3=g3, be3=be3,
        w4=w4, b4=b4,
    )

    out = jax.block_until_ready(player_forward(x, params))
    ref = ref_player(x, params)

    assert out.shape == (B, n_out), out.shape
    assert jnp.allclose(jnp.sum(out, axis=1), 1.0, atol=1e-5), "rows must sum to 1"
    assert jnp.allclose(out, ref, atol=2e-4, rtol=2e-4), (
        f"mismatch vs reference, max abs diff {jnp.max(jnp.abs(out - ref))}")
    print("KERNEL_OK")
</pallas_src>

<mosaic_0001>
module attributes {stable_mosaic.version = 11 : i64} {
  func.func @player_kernel(%arg0: memref<8x128xf32, #tpu.memory_space<vmem>>, %arg1: memref<128x256xf32, #tpu.memory_space<vmem>>, %arg2: memref<1x128xf32, #tpu.memory_space<vmem>>, %arg3: memref<1x128xf32, #tpu.memory_space<vmem>>, %arg4: memref<1x128xf32, #tpu.memory_space<vmem>>, %arg5: memref<128x128xf32, #tpu.memory_space<vmem>>, %arg6: memref<1x128xf32, #tpu.memory_space<vmem>>, %arg7: memref<1x128xf32, #tpu.memory_space<vmem>>, %arg8: memref<128x128xf32, #tpu.memory_space<vmem>>, %arg9: memref<1x128xf32, #tpu.memory_space<vmem>>, %arg10: memref<1x128xf32, #tpu.memory_space<vmem>>, %arg11: memref<128x128xf32, #tpu.memory_space<vmem>>, %arg12: memref<1x128xf32, #tpu.memory_space<vmem>>, %arg13: memref<8x128xf32, #tpu.memory_space<vmem>>) attributes {dimension_semantics = [], scalar_prefetch = 0 : i64, scratch_operands = 0 : i64, tpu.core_type = #tpu.core_type<tc>} {
    %c0 = arith.constant 0 : index
    %c0_0 = arith.constant 0 : index
    %0 = vector.load %arg0[%c0, %c0_0] : memref<8x128xf32, #tpu.memory_space<vmem>>, vector<8x128xf32>
    %c0_1 = arith.constant 0 : index
    %c0_2 = arith.constant 0 : index
    %1 = vector.load %arg1[%c0_1, %c0_2] : memref<128x256xf32, #tpu.memory_space<vmem>>, vector<128x256xf32>
    %cst = arith.constant dense<0.000000e+00> : vector<8x256xf32>
    %2 = tpu.matmul %0, %1, %cst {dimension_numbers = #tpu.dot_dimension_numbers<[1], [0], [0], [1], [0, 0, 1, 1], [], []>} : vector<8x128xf32>, vector<128x256xf32>, vector<8x256xf32> -> vector<8x256xf32>
    %3 = vector.extract_strided_slice %2 {offsets = [0, 0], sizes = [8, 128], strides = [1, 1]} : vector<8x256xf32> to vector<8x128xf32>
    %4 = vector.extract_strided_slice %2 {offsets = [0, 128], sizes = [8, 128], strides = [1, 1]} : vector<8x256xf32> to vector<8x128xf32>
    %c0_3 = arith.constant 0 : index
    %c0_4 = arith.constant 0 : index
    %5 = vector.load %arg2[%c0_3, %c0_4] : memref<1x128xf32, #tpu.memory_space<vmem>>, vector<1x128xf32>
    %6 = vector.broadcast %5 : vector<1x128xf32> to vector<8x128xf32>
    %7 = arith.addf %4, %6 : vector<8x128xf32>
    %c0_5 = arith.constant 0 : index
    %c0_6 = arith.constant 0 : index
    %8 = vector.load %arg3[%c0_5, %c0_6] : memref<1x128xf32, #tpu.memory_space<vmem>>, vector<1x128xf32>
    %c0_7 = arith.constant 0 : index
    %c0_8 = arith.constant 0 : index
    %9 = vector.load %arg4[%c0_7, %c0_8] : memref<1x128xf32, #tpu.memory_space<vmem>>, vector<1x128xf32>
    %cst_9 = arith.constant dense<0.000000e+00> : vector<128xf32>
    %10 = vector.multi_reduction <add>, %3, %cst_9 [0] : vector<8x128xf32> to vector<128xf32>
    %11 = vector.shape_cast %10 : vector<128xf32> to vector<1x128xf32>
    %cst_10 = arith.constant 8.000000e+00 : f32
    %12 = vector.broadcast %cst_10 : f32 to vector<1x128xf32>
    %13 = arith.divf %11, %12 : vector<1x128xf32>
    %14 = vector.broadcast %13 : vector<1x128xf32> to vector<8x128xf32>
    %15 = arith.subf %3, %14 : vector<8x128xf32>
    %16 = arith.mulf %15, %15 : vector<8x128xf32>
    %cst_11 = arith.constant dense<0.000000e+00> : vector<128xf32>
    %17 = vector.multi_reduction <add>, %16, %cst_11 [0] : vector<8x128xf32> to vector<128xf32>
    %18 = vector.shape_cast %17 : vector<128xf32> to vector<1x128xf32>
    %cst_12 = arith.constant 8.000000e+00 : f32
    %19 = vector.broadcast %cst_12 : f32 to vector<1x128xf32>
    %20 = arith.divf %18, %19 : vector<1x128xf32>
    %cst_13 = arith.constant 9.99999974E-6 : f32
    %21 = vector.broadcast %cst_13 : f32 to vector<1x128xf32>
    %22 = arith.addf %20, %21 : vector<1x128xf32>
    %23 = math.rsqrt %22 : vector<1x128xf32>
    %24 = arith.mulf %8, %23 : vector<1x128xf32>
    %25 = arith.mulf %13, %24 : vector<1x128xf32>
    %26 = arith.subf %9, %25 : vector<1x128xf32>
    %27 = vector.broadcast %24 : vector<1x128xf32> to vector<8x128xf32>
    %28 = arith.mulf %3, %27 : vector<8x128xf32>
    %29 = vector.broadcast %26 : vector<1x128xf32> to vector<8x128xf32>
    %30 = arith.addf %28, %29 : vector<8x128xf32>
    %cst_14 = arith.constant 0.000000e+00 : f32
    %31 = vector.broadcast %cst_14 : f32 to vector<8x128xf32>
    %32 = arith.maximumf %30, %31 : vector<8x128xf32>
    %33 = arith.addf %32, %7 : vector<8x128xf32>
    %c0_15 = arith.constant 0 : index
    %c0_16 = arith.constant 0 : index
    %34 = vector.load %arg5[%c0_15, %c0_16] : memref<128x128xf32, #tpu.memory_space<vmem>>, vector<128x128xf32>
    %cst_17 = arith.constant dense<0.000000e+00> : vector<8x128xf32>
    %35 = tpu.matmul %33, %34, %cst_17 {dimension_numbers = #tpu.dot_dimension_numbers<[1], [0], [0], [1], [0, 0, 1, 1], [], []>} : vector<8x128xf32>, vector<128x128xf32>, vector<8x128xf32> -> vector<8x128xf32>
    %c0_18 = arith.constant 0 : index
    %c0_19 = arith.constant 0 : index
    %36 = vector.load %arg6[%c0_18, %c0_19] : memref<1x128xf32, #tpu.memory_space<vmem>>, vector<1x128xf32>
    %c0_20 = arith.constant 0 : index
    %c0_21 = arith.constant 0 : index
    %37 = vector.load %arg7[%c0_20, %c0_21] : memref<1x128xf32, #tpu.memory_space<vmem>>, vector<1x128xf32>
    %cst_22 = arith.constant dense<0.000000e+00> : vector<128xf32>
    %38 = vector.multi_reduction <add>, %35, %cst_22 [0] : vector<8x128xf32> to vector<128xf32>
    %39 = vector.shape_cast %38 : vector<128xf32> to vector<1x128xf32>
    %cst_23 = arith.constant 8.000000e+00 : f32
    %40 = vector.broadcast %cst_23 : f32 to vector<1x128xf32>
    %41 = arith.divf %39, %40 : vector<1x128xf32>
    %42 = vector.broadcast %41 : vector<1x128xf32> to vector<8x128xf32>
    %43 = arith.subf %35, %42 : vector<8x128xf32>
    %44 = arith.mulf %43, %43 : vector<8x128xf32>
    %cst_24 = arith.constant dense<0.000000e+00> : vector<128xf32>
    %45 = vector.multi_reduction <add>, %44, %cst_24 [0] : vector<8x128xf32> to vector<128xf32>
    %46 = vector.shape_cast %45 : vector<128xf32> to vector<1x128xf32>
    %cst_25 = arith.constant 8.000000e+00 : f32
    %47 = vector.broadcast %cst_25 : f32 to vector<1x128xf32>
    %48 = arith.divf %46, %47 : vector<1x128xf32>
    %cst_26 = arith.constant 9.99999974E-6 : f32
    %49 = vector.broadcast %cst_26 : f32 to vector<1x128xf32>
    %50 = arith.addf %48, %49 : vector<1x128xf32>
    %51 = math.rsqrt %50 : vector<1x128xf32>
    %52 = arith.mulf %36, %51 : vector<1x128xf32>
    %53 = arith.mulf %41, %52 : vector<1x128xf32>
    %54 = arith.subf %37, %53 : vector<1x128xf32>
    %55 = vector.broadcast %52 : vector<1x128xf32> to vector<8x128xf32>
    %56 = arith.mulf %35, %55 : vector<8x128xf32>
    %57 = vector.broadcast %54 : vector<1x128xf32> to vector<8x128xf32>
    %58 = arith.addf %56, %57 : vector<8x128xf32>
    %cst_27 = arith.constant 0.000000e+00 : f32
    %59 = vector.broadcast %cst_27 : f32 to vector<8x128xf32>
    %60 = arith.maximumf %58, %59 : vector<8x128xf32>
    %61 = arith.addf %60, %33 : vector<8x128xf32>
    %c0_28 = arith.constant 0 : index
    %c0_29 = arith.constant 0 : index
    %62 = vector.load %arg8[%c0_28, %c0_29] : memref<128x128xf32, #tpu.memory_space<vmem>>, vector<128x128xf32>
    %cst_30 = arith.constant dense<0.000000e+00> : vector<8x128xf32>
    %63 = tpu.matmul %61, %62, %cst_30 {dimension_numbers = #tpu.dot_dimension_numbers<[1], [0], [0], [1], [0, 0, 1, 1], [], []>} : vector<8x128xf32>, vector<128x128xf32>, vector<8x128xf32> -> vector<8x128xf32>
    %c0_31 = arith.constant 0 : index
    %c0_32 = arith.constant 0 : index
    %64 = vector.load %arg9[%c0_31, %c0_32] : memref<1x128xf32, #tpu.memory_space<vmem>>, vector<1x128xf32>
    %c0_33 = arith.constant 0 : index
    %c0_34 = arith.constant 0 : index
    %65 = vector.load %arg10[%c0_33, %c0_34] : memref<1x128xf32, #tpu.memory_space<vmem>>, vector<1x128xf32>
    %cst_35 = arith.constant dense<0.000000e+00> : vector<128xf32>
    %66 = vector.multi_reduction <add>, %63, %cst_35 [0] : vector<8x128xf32> to vector<128xf32>
    %67 = vector.shape_cast %66 : vector<128xf32> to vector<1x128xf32>
    %cst_36 = arith.constant 8.000000e+00 : f32
    %68 = vector.broadcast %cst_36 : f32 to vector<1x128xf32>
    %69 = arith.divf %67, %68 : vector<1x128xf32>
    %70 = vector.broadcast %69 : vector<1x128xf32> to vector<8x128xf32>
    %71 = arith.subf %63, %70 : vector<8x128xf32>
    %72 = arith.mulf %71, %71 : vector<8x128xf32>
    %cst_37 = arith.constant dense<0.000000e+00> : vector<128xf32>
    %73 = vector.multi_reduction <add>, %72, %cst_37 [0] : vector<8x128xf32> to vector<128xf32>
    %74 = vector.shape_cast %73 : vector<128xf32> to vector<1x128xf32>
    %cst_38 = arith.constant 8.000000e+00 : f32
    %75 = vector.broadcast %cst_38 : f32 to vector<1x128xf32>
    %76 = arith.divf %74, %75 : vector<1x128xf32>
    %cst_39 = arith.constant 9.99999974E-6 : f32
    %77 = vector.broadcast %cst_39 : f32 to vector<1x128xf32>
    %78 = arith.addf %76, %77 : vector<1x128xf32>
    %79 = math.rsqrt %78 : vector<1x128xf32>
    %80 = arith.mulf %64, %79 : vector<1x128xf32>
    %81 = arith.mulf %69, %80 : vector<1x128xf32>
    %82 = arith.subf %65, %81 : vector<1x128xf32>
    %83 = vector.broadcast %80 : vector<1x128xf32> to vector<8x128xf32>
    %84 = arith.mulf %63, %83 : vector<8x128xf32>
    %85 = vector.broadcast %82 : vector<1x128xf32> to vector<8x128xf32>
    %86 = arith.addf %84, %85 : vector<8x128xf32>
    %cst_40 = arith.constant 0.000000e+00 : f32
    %87 = vector.broadcast %cst_40 : f32 to vector<8x128xf32>
    %88 = arith.maximumf %86, %87 : vector<8x128xf32>
    %89 = arith.addf %88, %61 : vector<8x128xf32>
    %c0_41 = arith.constant 0 : index
    %c0_42 = arith.constant 0 : index
    %90 = vector.load %arg11[%c0_41, %c0_42] : memref<128x128xf32, #tpu.memory_space<vmem>>, vector<128x128xf32>
    %cst_43 = arith.constant dense<0.000000e+00> : vector<8x128xf32>
    %91 = tpu.matmul %89, %90, %cst_43 {dimension_numbers = #tpu.dot_dimension_numbers<[1], [0], [0], [1], [0, 0, 1, 1], [], []>} : vector<8x128xf32>, vector<128x128xf32>, vector<8x128xf32> -> vector<8x128xf32>
    %c0_44 = arith.constant 0 : index
    %c0_45 = arith.constant 0 : index
    %92 = vector.load %arg12[%c0_44, %c0_45] : memref<1x128xf32, #tpu.memory_space<vmem>>, vector<1x128xf32>
    %93 = vector.broadcast %92 : vector<1x128xf32> to vector<8x128xf32>
    %94 = arith.addf %91, %93 : vector<8x128xf32>
    %cst_46 = arith.constant dense<0xFF800000> : vector<8xf32>
    %95 = vector.multi_reduction <maximumf>, %94, %cst_46 [1] : vector<8x128xf32> to vector<8xf32>
    %96 = vector.shape_cast %95 : vector<8xf32> to vector<8x1xf32>
    %97 = vector.broadcast %96 : vector<8x1xf32> to vector<8x128xf32>
    %98 = arith.subf %94, %97 : vector<8x128xf32>
    %99 = math.exp %98 : vector<8x128xf32>
    %cst_47 = arith.constant dense<0.000000e+00> : vector<8xf32>
    %100 = vector.multi_reduction <add>, %99, %cst_47 [1] : vector<8x128xf32> to vector<8xf32>
    %101 = vector.shape_cast %100 : vector<8xf32> to vector<8x1xf32>
    %102 = vector.broadcast %101 : vector<8x1xf32> to vector<8x128xf32>
    %103 = arith.divf %99, %102 : vector<8x128xf32>
    %c0_48 = arith.constant 0 : index
    %c0_49 = arith.constant 0 : index
    %104 = vector.load %arg13[%c0_48, %c0_49] : memref<8x128xf32, #tpu.memory_space<vmem>>, vector<8x128xf32>
    tpu.vector_store %arg13[%c0_48, %c0_49], %103 {strides = array<i32>} : memref<8x128xf32, #tpu.memory_space<vmem>>, vector<8x128xf32>,
    return
  }
}

</mosaic_0001>

<llo_original>
// kernel: player_forward.1
$region0: #{player_forward.1}
  #allocation0 [shape = 'u32[]', space=smem, size = 0x4, offset = 0x4, fixed_abs, tag = 'smem constant byte address 0x4 - core index']
  #allocation1 [shape = 'u32[72,128]{1,0:T(1,128)}', space=vmem, size = 0x9000, scoped, tag = 'internal scratch']
  %s0 = inlined_call_operand.vmem [shape: f32[8,128], index: 0, kind: input, shape index: {}]
  %s1 = inlined_call_operand.vmem [shape: f32[128,256], index: 1, kind: input, shape index: {}]
  %s2 = inlined_call_operand.vmem [shape: f32[1,128], index: 2, kind: input, shape index: {}]
  %s3 = inlined_call_operand.vmem [shape: f32[1,128], index: 3, kind: input, shape index: {}]
  %s4 = inlined_call_operand.vmem [shape: f32[1,128], index: 4, kind: input, shape index: {}]
  %s5 = inlined_call_operand.vmem [shape: f32[128,128], index: 5, kind: input, shape index: {}]
  %s6 = inlined_call_operand.vmem [shape: f32[1,128], index: 6, kind: input, shape index: {}]
  %s7 = inlined_call_operand.vmem [shape: f32[1,128], index: 7, kind: input, shape index: {}]
  %s8 = inlined_call_operand.vmem [shape: f32[128,128], index: 8, kind: input, shape index: {}]
  %s9 = inlined_call_operand.vmem [shape: f32[1,128], index: 9, kind: input, shape index: {}]
  %s10 = inlined_call_operand.vmem [shape: f32[1,128], index: 10, kind: input, shape index: {}]
  %s11 = inlined_call_operand.vmem [shape: f32[128,128], index: 11, kind: input, shape index: {}]
  %s12 = inlined_call_operand.vmem [shape: f32[1,128], index: 12, kind: input, shape index: {}]
  %s13 = inlined_call_operand.hbm [shape: f32[8,128], index: 13, kind: output, shape index: {}]
  %s14 = sld [smem:[#allocation0]]
  $region62: #{player_forward.1} parent=0
    _
  %s16 = ssub.s32 1, %s14
  %s17 = scalar_select 0, %s16, %s14
  $region1: #{player_forward.1} parent=0
    #allocation2 [shape = 'u8[4096]{0}', space=vmem, size = 0x1000, scoped, tag = 'output window, operand 0, single buffered']
    #allocation3 [shape = 's32[1]{0}', space=sflag, size = 0x4, scoped, tag = 'scoped memory for player_forward.1']
    %18 = vsyncpa [#allocation3], 0
    // Predicated region
    $region2: #{player_forward.1} parent=1 // pred_check
      _
    $region3: #{player_forward.1} parent=1 // pred_check_branch
      %20 = sbr.rel (0) target = $region5
    $region4: #{player_forward.1} parent=1 // pred_region
      _
    $region5: #{player_forward.1} parent=1 // pred_fallthru
      _
    // Predicated region
    $region6: #{player_forward.1} parent=1 // pred_check
      _
    $region7: #{player_forward.1} parent=1 // pred_check_branch
      %22 = sbr.rel (0) target = $region9
    $region8: #{player_forward.1} parent=1 // pred_region
      _
    $region9: #{player_forward.1} parent=1 // pred_fallthru
      _
    // Predicated region
    $region10: #{player_forward.1} parent=1 // pred_check
      _
    $region11: #{player_forward.1} parent=1 // pred_check_branch
      %24 = sbr.rel (0) target = $region13
    $region12: #{player_forward.1} parent=1 // pred_region
      _
    $region13: #{player_forward.1} parent=1 // pred_fallthru
      _
    // Predicated region
    $region14: #{player_forward.1} parent=1 // pred_check
      _
    $region15: #{player_forward.1} parent=1 // pred_check_branch
      %26 = sbr.rel (0) target = $region17
    $region16: #{player_forward.1} parent=1 // pred_region
      _
    $region17: #{player_forward.1} parent=1 // pred_fallthru
      _
    // Predicated region
    $region18: #{player_forward.1} parent=1 // pred_check
      _
    $region19: #{player_forward.1} parent=1 // pred_check_branch
      %28 = sbr.rel (0) target = $region21
    $region20: #{player_forward.1} parent=1 // pred_region
      _
    $region21: #{player_forward.1} parent=1 // pred_fallthru
      _
    // Predicated region
    $region22: #{player_forward.1} parent=1 // pred_check
      _
    $region23: #{player_forward.1} parent=1 // pred_check_branch
      %30 = sbr.rel (0) target = $region25
    $region24: #{player_forward.1} parent=1 // pred_region
      _
    $region25: #{player_forward.1} parent=1 // pred_fallthru
      _
    // Predicated region
    $region26: #{player_forward.1} parent=1 // pred_check
      _
    $region27: #{player_forward.1} parent=1 // pred_check_branch
      %32 = sbr.rel (0) target = $region29
    $region28: #{player_forward.1} parent=1 // pred_region
      _
    $region29: #{player_forward.1} parent=1 // pred_fallthru
      _
    // Predicated region
    $region30: #{player_forward.1} parent=1 // pred_check
      _
    $region31: #{player_forward.1} parent=1 // pred_check_branch
      %34 = sbr.rel (0) target = $region33
    $region32: #{player_forward.1} parent=1 // pred_region
      _
    $region33: #{player_forward.1} parent=1 // pred_fallthru
      _
    // Predicated region
    $region34: #{player_forward.1} parent=1 // pred_check
      _
    $region35: #{player_forward.1} parent=1 // pred_check_branch
      %36 = sbr.rel (0) target = $region37
    $region36: #{player_forward.1} parent=1 // pred_region
      _
    $region37: #{player_forward.1} parent=1 // pred_fallthru
      _
    // Predicated region
    $region38: #{player_forward.1} parent=1 // pred_check
      _
    $region39: #{player_forward.1} parent=1 // pred_check_branch
      %38 = sbr.rel (0) target = $region41
    $region40: #{player_forward.1} parent=1 // pred_region
      _
    $region41: #{player_forward.1} parent=1 // pred_fallthru
      _
    // Predicated region
    $region42: #{player_forward.1} parent=1 // pred_check
      _
    $region43: #{player_forward.1} parent=1 // pred_check_branch
      %40 = sbr.rel (0) target = $region45
    $region44: #{player_forward.1} parent=1 // pred_region
      _
    $region45: #{player_forward.1} parent=1 // pred_fallthru
      _
    // Predicated region
    $region46: #{player_forward.1} parent=1 // pred_check
      _
    $region47: #{player_forward.1} parent=1 // pred_check_branch
      %42 = sbr.rel (0) target = $region49
    $region48: #{player_forward.1} parent=1 // pred_region
      _
    $region49: #{player_forward.1} parent=1 // pred_fallthru
      _
    // Predicated region
    $region50: #{player_forward.1} parent=1 // pred_check
      _
    $region51: #{player_forward.1} parent=1 // pred_check_branch
      %44 = sbr.rel (0) target = $region53
    $region52: #{player_forward.1} parent=1 // pred_region
      _
    $region53: #{player_forward.1} parent=1 // pred_fallthru
      _
    %v45 = vld [vmem:[%s0] sm:$0xff]
    %v46 = vld [vmem:[%s1] sm:$0xff]
    %v47 = vld [vmem:[%s1 + $0x8] sm:$0xff]
    %v48 = vld [vmem:[%s1 + $0x10] sm:$0xff]
    %v49 = vld [vmem:[%s1 + $0x18] sm:$0xff]
    %v50 = vld [vmem:[%s1 + $0x20] sm:$0xff]
    %v51 = vld [vmem:[%s1 + $0x28] sm:$0xff]
    %v52 = vld [vmem:[%s1 + $0x30] sm:$0xff]
    %v53 = vld [vmem:[%s1 + $0x38] sm:$0xff]
    %v54 = vld [vmem:[%s1 + $0x40] sm:$0xff]
    %v55 = vld [vmem:[%s1 + $0x48] sm:$0xff]
    %v56 = vld [vmem:[%s1 + $0x50] sm:$0xff]
    %v57 = vld [vmem:[%s1 + $0x58] sm:$0xff]
    %v58 = vld [vmem:[%s1 + $0x60] sm:$0xff]
    %v59 = vld [vmem:[%s1 + $0x68] sm:$0xff]
    %v60 = vld [vmem:[%s1 + $0x70] sm:$0xff]
    %v61 = vld [vmem:[%s1 + $0x78] sm:$0xff]
    %v62 = vld [vmem:[%s1 + $0x80] sm:$0xff]
    %v63 = vld [vmem:[%s1 + $0x88] sm:$0xff]
    %v64 = vld [vmem:[%s1 + $0x90] sm:$0xff]
    %v65 = vld [vmem:[%s1 + $0x98] sm:$0xff]
    %v66 = vld [vmem:[%s1 + $0xa0] sm:$0xff]
    %v67 = vld [vmem:[%s1 + $0xa8] sm:$0xff]
    %v68 = vld [vmem:[%s1 + $0xb0] sm:$0xff]
    %v69 = vld [vmem:[%s1 + $0xb8] sm:$0xff]
    %v70 = vld [vmem:[%s1 + $0xc0] sm:$0xff]
    %v71 = vld [vmem:[%s1 + $0xc8] sm:$0xff]
    %v72 = vld [vmem:[%s1 + $0xd0] sm:$0xff]
    %v73 = vld [vmem:[%s1 + $0xd8] sm:$0xff]
    %v74 = vld [vmem:[%s1 + $0xe0] sm:$0xff]
    %v75 = vld [vmem:[%s1 + $0xe8] sm:$0xff]
    %v76 = vld [vmem:[%s1 + $0xf0] sm:$0xff]
    %v77 = vld [vmem:[%s1 + $0xf8] sm:$0xff]
    %78 = vmatpush.msra.mxu0 %v76
    %79 = vmatpush.msra.mxu0 %v74
    %80 = vmatpush.msra.mxu0 %v72
    %81 = vmatpush.msra.mxu0 %v70
    %82 = vmatpush.msra.mxu0 %v68
    %83 = vmatpush.msra.mxu0 %v66
    %84 = vmatpush.msra.mxu0 %v64
    %85 = vmatpush.msra.mxu0 %v62
    %86 = vmatpush.msra.mxu0 %v60
    %87 = vmatpush.msra.mxu0 %v58
    %88 = vmatpush.msra.mxu0 %v56
    %89 = vmatpush.msra.mxu0 %v54
    %90 = vmatpush.msra.mxu0 %v52
    %91 = vmatpush.msra.mxu0 %v50
    %92 = vmatpush.msra.mxu0 %v48
    %93 = vmatpush.msra.mxu0 %v46
    %94 = vmatmul.f32.gmra.mxu0 %v45
    %v95 = vpop.f32.mrf.mxu0
    %v96 = vadd.f32 0.0, %v95
    %97 = vdwg.mxu0
    %98 = vmatpush.msra.mxu0 %v77
    %99 = vmatpush.msra.mxu0 %v75
    %100 = vmatpush.msra.mxu0 %v73
    %101 = vmatpush.msra.mxu0 %v71
    %102 = vmatpush.msra.mxu0 %v69
    %103 = vmatpush.msra.mxu0 %v67
    %104 = vmatpush.msra.mxu0 %v65
    %105 = vmatpush.msra.mxu0 %v63
    %106 = vmatpush.msra.mxu0 %v61
    %107 = vmatpush.msra.mxu0 %v59
    %108 = vmatpush.msra.mxu0 %v57
    %109 = vmatpush.msra.mxu0 %v55
    %110 = vmatpush.msra.mxu0 %v53
    %111 = vmatpush.msra.mxu0 %v51
    %112 = vmatpush.msra.mxu0 %v49
    %113 = vmatpush.msra.mxu0 %v47
    %114 = vmatmul.f32.gmra.mxu0 %v45
    %v115 = vpop.f32.mrf.mxu0
    %v116 = vadd.f32 0.0, %v115
    %117 = vdwg.mxu0
    %v118 = vld [vmem:[%s2] sm:$0x1]
    %v120 = vperm.slane %v118, 0
    %v122 = vadd.f32 %v116, %v120
    %v123 = vld [vmem:[%s3] sm:$0x1]
    %v124 = vld [vmem:[%s4] sm:$0x1]
    %v125 = vrot.slane %v96, 4
    %v126 = vadd.f32 %v96, %v125
    %v127 = vrot.slane %v126, 2
    %v128 = vadd.f32 %v126, %v127
    %v129 = vrot.slane %v128, 1
    %v130 = vadd.f32 %v128, %v129
    %v131 = vrcp.pop 8.0
    %v132 = vmul.f32 8.0, %v131
    %v133 = vsub.f32 1.0, %v132
    %v134 = vmul.f32 %v131, %v133
    %v135 = vadd.f32 %v131, %v134
    %vm136 = vweird.f32 %v131
    %v137 = vsel %vm136, %v131, %v135
    %v138 = vmul.f32 %v130, %v137
    %v139 = vsub.f32 %v96, %v138
    %v140 = vmul.f32 %v139, %v139
    %v141 = vrot.slane %v140, 4
    %v142 = vadd.f32 %v140, %v141
    %v143 = vrot.slane %v142, 2
    %v144 = vadd.f32 %v142, %v143
    %v145 = vrot.slane %v144, 1
    %v146 = vadd.f32 %v144, %v145
    %v147 = vmul.f32 %v146, %v137
    %v148 = vadd.f32 %v147, 1e-05
    %v149 = vrsqrt.pop %v148
    %v150 = vmul.f32 %v149, %v148
    %v151 = vmul.f32 %v150, %v149
    %v152 = vmul.f32 0.5, %v151
    %v153 = vsub.f32 1.5, %v152
    %v154 = vmul.f32 %v149, %v153
    %vm155 = vweird.f32 %v148
    %vm156 = vweird.f32 %v149
    %vm157 = vmor %vm155, %vm156
    %v158 = vsel %vm157, %v149, %v154
    %v159 = vmul.f32 %v123, %v158
    %v160 = vmul.f32 %v138, %v159
    %v161 = vsub.f32 %v124, %v160
    %v163 = vperm.slane %v159, 0
    %v165 = vmul.f32 %v96, %v163
    %v167 = vperm.slane %v161, 0
    %v169 = vadd.f32 %v165, %v167
    %v170 = vmax.f32 %v169, 0.0
    %v171 = vadd.f32 %v170, %v122
    %v172 = vld [vmem:[%s5] sm:$0xff]
    %v173 = vld [vmem:[%s5 + $0x8] sm:$0xff]
    %v174 = vld [vmem:[%s5 + $0x10] sm:$0xff]
    %v175 = vld [vmem:[%s5 + $0x18] sm:$0xff]
    %v176 = vld [vmem:[%s5 + $0x20] sm:$0xff]
    %v177 = vld [vmem:[%s5 + $0x28] sm:$0xff]
    %v178 = vld [vmem:[%s5 + $0x30] sm:$0xff]
    %v179 = vld [vmem:[%s5 + $0x38] sm:$0xff]
    %v180 = vld [vmem:[%s5 + $0x40] sm:$0xff]
    %v181 = vld [vmem:[%s5 + $0x48] sm:$0xff]
    %v182 = vld [vmem:[%s5 + $0x50] sm:$0xff]
    %v183 = vld [vmem:[%s5 + $0x58] sm:$0xff]
    %v184 = vld [vmem:[%s5 + $0x60] sm:$0xff]
    %v185 = vld [vmem:[%s5 + $0x68] sm:$0xff]
    %v186 = vld [vmem:[%s5 + $0x70] sm:$0xff]
    %v187 = vld [vmem:[%s5 + $0x78] sm:$0xff]
    %188 = vmatpush.msra.mxu0 %v187
    %189 = vmatpush.msra.mxu0 %v186
    %190 = vmatpush.msra.mxu0 %v185
    %191 = vmatpush.msra.mxu0 %v184
    %192 = vmatpush.msra.mxu0 %v183
    %193 = vmatpush.msra.mxu0 %v182
    %194 = vmatpush.msra.mxu0 %v181
    %195 = vmatpush.msra.mxu0 %v180
    %196 = vmatpush.msra.mxu0 %v179
    %197 = vmatpush.msra.mxu0 %v178
    %198 = vmatpush.msra.mxu0 %v177
    %199 = vmatpush.msra.mxu0 %v176
    %200 = vmatpush.msra.mxu0 %v175
    %201 = vmatpush.msra.mxu0 %v174
    %202 = vmatpush.msra.mxu0 %v173
    %203 = vmatpush.msra.mxu0 %v172
    %204 = vmatmul.f32.gmra.mxu0 %v171
    %v205 = vpop.f32.mrf.mxu0
    %v206 = vadd.f32 0.0, %v205
    %207 = vdwg.mxu0
    %v208 = vld [vmem:[%s6] sm:$0x1]
    %v209 = vld [vmem:[%s7] sm:$0x1]
    %v210 = vrot.slane %v206, 4
    %v211 = vadd.f32 %v206, %v210
    %v212 = vrot.slane %v211, 2
    %v213 = vadd.f32 %v211, %v212
    %v214 = vrot.slane %v213, 1
    %v215 = vadd.f32 %v213, %v214
    %v216 = vmul.f32 %v215, %v137
    %v217 = vsub.f32 %v206, %v216
    %v218 = vmul.f32 %v217, %v217
    %v219 = vrot.slane %v218, 4
    %v220 = vadd.f32 %v218, %v219
    %v221 = vrot.slane %v220, 2
    %v222 = vadd.f32 %v220, %v221
    %v223 = vrot.slane %v222, 1
    %v224 = vadd.f32 %v222, %v223
    %v225 = vmul.f32 %v224, %v137
    %v226 = vadd.f32 %v225, 1e-05
    %v227 = vrsqrt.pop %v226
    %v228 = vmul.f32 %v227, %v226
    %v229 = vmul.f32 %v228, %v227
    %v230 = vmul.f32 0.5, %v229
    %v231 = vsub.f32 1.5, %v230
    %v232 = vmul.f32 %v227, %v231
    %vm233 = vweird.f32 %v226
    %vm234 = vweird.f32 %v227
    %vm235 = vmor %vm233, %vm234
    %v236 = vsel %vm235, %v227, %v232
    %v237 = vmul.f32 %v208, %v236
    %v238 = vmul.f32 %v216, %v237
    %v239 = vsub.f32 %v209, %v238
    %v241 = vperm.slane %v237, 0
    %v243 = vmul.f32 %v206, %v241
    %v245 = vperm.slane %v239, 0
    %v247 = vadd.f32 %v243, %v245
    %v248 = vmax.f32 %v247, 0.0
    %v249 = vadd.f32 %v248, %v171
    %v250 = vld [vmem:[%s8] sm:$0xff]
    %v251 = vld [vmem:[%s8 + $0x8] sm:$0xff]
    %v252 = vld [vmem:[%s8 + $0x10] sm:$0xff]
    %v253 = vld [vmem:[%s8 + $0x18] sm:$0xff]
    %v254 = vld [vmem:[%s8 + $0x20] sm:$0xff]
    %v255 = vld [vmem:[%s8 + $0x28] sm:$0xff]
    %v256 = vld [vmem:[%s8 + $0x30] sm:$0xff]
    %v257 = vld [vmem:[%s8 + $0x38] sm:$0xff]
    %v258 = vld [vmem:[%s8 + $0x40] sm:$0xff]
    %v259 = vld [vmem:[%s8 + $0x48] sm:$0xff]
    %v260 = vld [vmem:[%s8 + $0x50] sm:$0xff]
    %v261 = vld [vmem:[%s8 + $0x58] sm:$0xff]
    %v262 = vld [vmem:[%s8 + $0x60] sm:$0xff]
    %v263 = vld [vmem:[%s8 + $0x68] sm:$0xff]
    %v264 = vld [vmem:[%s8 + $0x70] sm:$0xff]
    %v265 = vld [vmem:[%s8 + $0x78] sm:$0xff]
    %266 = vmatpush.msra.mxu0 %v265
    %267 = vmatpush.msra.mxu0 %v264
    %268 = vmatpush.msra.mxu0 %v263
    %269 = vmatpush.msra.mxu0 %v262
    %270 = vmatpush.msra.mxu0 %v261
    %271 = vmatpush.msra.mxu0 %v260
    %272 = vmatpush.msra.mxu0 %v259
    %273 = vmatpush.msra.mxu0 %v258
    %274 = vmatpush.msra.mxu0 %v257
    %275 = vmatpush.msra.mxu0 %v256
    %276 = vmatpush.msra.mxu0 %v255
    %277 = vmatpush.msra.mxu0 %v254
    %278 = vmatpush.msra.mxu0 %v253
    %279 = vmatpush.msra.mxu0 %v252
    %280 = vmatpush.msra.mxu0 %v251
    %281 = vmatpush.msra.mxu0 %v250
    %282 = vmatmul.f32.gmra.mxu0 %v249
    %v283 = vpop.f32.mrf.mxu0
    %v284 = vadd.f32 0.0, %v283
    %285 = vdwg.mxu0
    %v286 = vld [vmem:[%s9] sm:$0x1]
    %v287 = vld [vmem:[%s10] sm:$0x1]
    %v288 = vrot.slane %v284, 4
    %v289 = vadd.f32 %v284, %v288
    %v290 = vrot.slane %v289, 2
    %v291 = vadd.f32 %v289, %v290
    %v292 = vrot.slane %v291, 1
    %v293 = vadd.f32 %v291, %v292
    %v294 = vmul.f32 %v293, %v137
    %v295 = vsub.f32 %v284, %v294
    %v296 = vmul.f32 %v295, %v295
    %v297 = vrot.slane %v296, 4
    %v298 = vadd.f32 %v296, %v297
    %v299 = vrot.slane %v298, 2
    %v300 = vadd.f32 %v298, %v299
    %v301 = vrot.slane %v300, 1
    %v302 = vadd.f32 %v300, %v301
    %v303 = vmul.f32 %v302, %v137
    %v304 = vadd.f32 %v303, 1e-05
    %v305 = vrsqrt.pop %v304
    %v306 = vmul.f32 %v305, %v304
    %v307 = vmul.f32 %v306, %v305
    %v308 = vmul.f32 0.5, %v307
    %v309 = vsub.f32 1.5, %v308
    %v310 = vmul.f32 %v305, %v309
    %vm311 = vweird.f32 %v304
    %vm312 = vweird.f32 %v305
    %vm313 = vmor %vm311, %vm312
    %v314 = vsel %vm313, %v305, %v310
    %v315 = vmul.f32 %v286, %v314
    %v316 = vmul.f32 %v294, %v315
    %v317 = vsub.f32 %v287, %v316
    %v319 = vperm.slane %v315, 0
    %v321 = vmul.f32 %v284, %v319
    %v323 = vperm.slane %v317, 0
    %v325 = vadd.f32 %v321, %v323
    %v326 = vmax.f32 %v325, 0.0
    %v327 = vadd.f32 %v326, %v249
    %v328 = vld [vmem:[%s11] sm:$0xff]
    %v329 = vld [vmem:[%s11 + $0x8] sm:$0xff]
    %v330 = vld [vmem:[%s11 + $0x10] sm:$0xff]
    %v331 = vld [vmem:[%s11 + $0x18] sm:$0xff]
    %v332 = vld [vmem:[%s11 + $0x20] sm:$0xff]
    %v333 = vld [vmem:[%s11 + $0x28] sm:$0xff]
    %v334 = vld [vmem:[%s11 + $0x30] sm:$0xff]
    %v335 = vld [vmem:[%s11 + $0x38] sm:$0xff]
    %v336 = vld [vmem:[%s11 + $0x40] sm:$0xff]
    %v337 = vld [vmem:[%s11 + $0x48] sm:$0xff]
    %v338 = vld [vmem:[%s11 + $0x50] sm:$0xff]
    %v339 = vld [vmem:[%s11 + $0x58] sm:$0xff]
    %v340 = vld [vmem:[%s11 + $0x60] sm:$0xff]
    %v341 = vld [vmem:[%s11 + $0x68] sm:$0xff]
    %v342 = vld [vmem:[%s11 + $0x70] sm:$0xff]
    %v343 = vld [vmem:[%s11 + $0x78] sm:$0xff]
    %v344 = vld [vmem:[%s12] sm:$0x1]
    %v346 = vperm.slane %v344, 0
    %348 = vmatpush.msra.mxu0 %v343
    %349 = vmatpush.msra.mxu0 %v342
    %350 = vmatpush.msra.mxu0 %v341
    %351 = vmatpush.msra.mxu0 %v340
    %352 = vmatpush.msra.mxu0 %v339
    %353 = vmatpush.msra.mxu0 %v338
    %354 = vmatpush.msra.mxu0 %v337
    %355 = vmatpush.msra.mxu0 %v336
    %356 = vmatpush.msra.mxu0 %v335
    %357 = vmatpush.msra.mxu0 %v334
    %358 = vmatpush.msra.mxu0 %v333
    %359 = vmatpush.msra.mxu0 %v332
    %360 = vmatpush.msra.mxu0 %v331
    %361 = vmatpush.msra.mxu0 %v330
    %362 = vmatpush.msra.mxu0 %v329
    %363 = vmatpush.msra.mxu0 %v328
    %364 = vmatmul.f32.gmra.mxu0 %v327
    %v365 = vpop.f32.mrf.mxu0
    %v366 = vadd.f32 %v346, %v365
    %367 = vdwg.mxu0
    %368 = vmax.xlane.f32.xlu0 %v366
    %v369 = vpop.xlane.xlu0 %368
    %v370 = vsub.f32 %v366, %v369
    %v371 = vmul.f32 %v370, 1.442695
    %v372 = vpow.pop %v371
    %373 = vadd.xlane.f32.xlu0 %v372
    %v374 = vpop.xlane.xlu0 %373
    %v375 = vrcp.pop %v374
    %v376 = vmul.f32 %v374, %v375
    %v377 = vsub.f32 1.0, %v376
    %v378 = vmul.f32 %v375, %v377
    %v379 = vadd.f32 %v375, %v378
    %vm380 = vweird.f32 %v374
    %vm381 = vweird.f32 %v375
    %vm382 = vmor %vm380, %vm381
    %v383 = vsel %vm382, %v375, %v379
    %v384 = vand.u32 2147483647, %v374
    %vm385 = vcmp.eq.f32.partialorder %v384, 8.507059e+37
    %v386 = vand.u32 %v374, 2147483648
    %v387 = vor.u32 1.1754944e-38, %v386
    %v388 = vsel %vm385, %v387, %v383
    %v389 = vmul.f32 %v372, %v388
    %390 = vst [vmem:[#allocation2] sm:$0xff] %v389
    // Predicated region
    $region54: #{player_forward.1} parent=1 // pred_check
      _
    $region55: #{player_forward.1} parent=1 // pred_check_branch
      %392 = sbr.rel (0) target = $region57
    $region56: #{player_forward.1} parent=1 // pred_region
      %394 = vsyncadd [#allocation3], 0
      %s396 = sshll.u32 [#allocation2], 4
      %s397 = int_to_ptr.vmem [resolvable:$true] %s396
      %s398 = sshll.u32 %s13, 4
      %s399 = int_to_ptr.hbm [resolvable:$true] %s398
      %401 = dma.vmem_to_hbm [thread:$0]  %s397, 128, %s399, [#allocation3]
    $region57: #{player_forward.1} parent=1 // pred_fallthru
      _
    // Predicated region
    $region58: #{player_forward.1} parent=1 // pred_check
      _
    $region59: #{player_forward.1} parent=1 // pred_check_branch
      %403 = sbr.rel (0) target = $region61
    $region60: #{player_forward.1} parent=1 // pred_region
      %405 = dma.done [#allocation3], 128
    $region61: #{player_forward.1} parent=1 // pred_fallthru
      _
    %406 = vsyncpa [#allocation3], 1

</llo_original>
